<compile_context>
chip_gen: v5e
topology: v5e:2x2
jax: 0.10.0
libtpu: 0.0.40
codegen_flags: <defaults>
</compile_context>

<pallas_src>
import numpy as np
import jax
import jax.numpy as jnp
from jax import lax
from jax.experimental import pallas as pl
from jax.experimental.pallas import tpu as pltpu


_CPARAMS = pltpu.CompilerParams(
    dimension_semantics=("parallel",),
    vmem_limit_bytes=32 * 1024 * 1024,
)


# ----------------------------- Pallas kernels -----------------------------

def _down_kernel(x_ref, r_ref, g_ref, o_ref):
    # x_ref: (1, Hp, Wp*Ci) f32 padded input (packed NHWC); r_ref: (4, Ho, Hp) bf16 row-tap selectors;
    # g_ref: (4, Wp*Ci, Wo*Co) bf16 col-tap/channel operator; o_ref: (1, Ho, Wo*Co) f32.
    x = x_ref[0]
    x = jnp.where(x >= 0, x, 0.2 * x)          # LeakyReLU(0.2), once per source element
    xb = x.astype(jnp.bfloat16)                # bf16 MXU operands, f32 accumulation
    acc = None
    for i in range(r_ref.shape[0]):            # 4 kernel-row taps, statically unrolled
        rows = jnp.dot(r_ref[i], xb, preferred_element_type=jnp.float32)      # (Ho, Wp*Ci)
        term = jnp.dot(rows.astype(jnp.bfloat16), g_ref[i],
                       preferred_element_type=jnp.float32)                    # (Ho, Wo*Co)
        acc = term if acc is None else acc + term
    o_ref[0] = acc


def _upconv_kernel(xd_ref, mh_ref, f_ref, y_ref, s_ref, q_ref):
    # Fused ReLU + bilinear x2 (align_corners=True) + 3x3 conv, plus per-image BN partial stats.
    # xd_ref: (1, Ho, Wo*Ci) f32; mh_ref: (3, Hu, Ho) bf16; f_ref: (3, Wo*Ci, Wu*Co) bf16
    # y_ref : (1, Hu, Wu*Co) f32 pre-BN output
    # s_ref/q_ref: (1, 1, Wu*Co) f32 column sum / sum-of-squares partials (single-pass stats)
    r = jnp.maximum(xd_ref[0], 0.0).astype(jnp.bfloat16)   # ReLU once per element
    acc = None
    for dy in range(mh_ref.shape[0]):          # 3 kernel-row taps, statically unrolled
        t = jnp.dot(r, f_ref[dy], preferred_element_type=jnp.float32)          # (Ho, Wu*Co)
        term = jnp.dot(mh_ref[dy], t.astype(jnp.bfloat16),
                       preferred_element_type=jnp.float32)                     # (Hu, Wu*Co)
        acc = term if acc is None else acc + term
    y_ref[0] = acc
    s_ref[0] = jnp.sum(acc, axis=0, keepdims=True)
    q_ref[0] = jnp.sum(acc * acc, axis=0, keepdims=True)


def _bn_apply_kernel(y_ref, sc_ref, sh_ref, o_ref):
    # Phase-2 BatchNorm: per-channel scale/shift (already folded with mean/var/gamma/beta).
    o_ref[0] = y_ref[0] * sc_ref[...] + sh_ref[...]


# ----------------------------- pallas_call wrappers -----------------------------

def _down_conv(xp_packed, R, G):
    B, Hp, WpCi = xp_packed.shape
    KH, Ho, _ = R.shape
    WoCo = G.shape[2]
    return pl.pallas_call(
        _down_kernel,
        out_shape=jax.ShapeDtypeStruct((B, Ho, WoCo), jnp.float32),
        grid=(B,),
        in_specs=[
            pl.BlockSpec((1, Hp, WpCi), lambda b: (b, 0, 0)),
            pl.BlockSpec((KH, Ho, Hp), lambda b: (0, 0, 0)),
            pl.BlockSpec((KH, WpCi, WoCo), lambda b: (0, 0, 0)),
        ],
        out_specs=pl.BlockSpec((1, Ho, WoCo), lambda b: (b, 0, 0)),
        compiler_params=_CPARAMS,
    )(xp_packed, R, G)


def _up_conv(xd, Mh_s, F):
    B, Ho, WoCi = xd.shape
    KH, Hu, _ = Mh_s.shape
    WuCo = F.shape[2]
    return pl.pallas_call(
        _upconv_kernel,
        out_shape=(jax.ShapeDtypeStruct((B, Hu, WuCo), jnp.float32),
                   jax.ShapeDtypeStruct((B, 1, WuCo), jnp.float32),
                   jax.ShapeDtypeStruct((B, 1, WuCo), jnp.float32)),
        grid=(B,),
        in_specs=[
            pl.BlockSpec((1, Ho, WoCi), lambda b: (b, 0, 0)),
            pl.BlockSpec((KH, Hu, Ho), lambda b: (0, 0, 0)),
            pl.BlockSpec((KH, WoCi, WuCo), lambda b: (0, 0, 0)),
        ],
        out_specs=(pl.BlockSpec((1, Hu, WuCo), lambda b: (b, 0, 0)),
                   pl.BlockSpec((1, 1, WuCo), lambda b: (b, 0, 0)),
                   pl.BlockSpec((1, 1, WuCo), lambda b: (b, 0, 0))),
        compiler_params=_CPARAMS,
    )(xd, Mh_s, F)


def _bn_apply(y, scale_row, shift_row):
    B, Hu, WuCo = y.shape
    return pl.pallas_call(
        _bn_apply_kernel,
        out_shape=jax.ShapeDtypeStruct((B, Hu, WuCo), jnp.float32),
        grid=(B,),
        in_specs=[
            pl.BlockSpec((1, Hu, WuCo), lambda b: (b, 0, 0)),
            pl.BlockSpec((1, WuCo), lambda b: (0, 0)),
            pl.BlockSpec((1, WuCo), lambda b: (0, 0)),
        ],
        out_specs=pl.BlockSpec((1, Hu, WuCo), lambda b: (b, 0, 0)),
        compiler_params=_CPARAMS,
    )(y, scale_row, shift_row)


# ----------------------------- operator construction (host side) -----------------------------

def _bilinear_matrix(n_out, n_in):
    """Dense 1-D bilinear interpolation matrix, align_corners=True semantics."""
    M = np.zeros((n_out, n_in), dtype=np.float64)
    if n_in == 1:
        M[:, 0] = 1.0
        return M.astype(np.float32)
    src = np.arange(n_out, dtype=np.float64) * (n_in - 1) / (n_out - 1)
    lo = np.clip(np.floor(src).astype(np.int64), 0, n_in - 2)
    frac = src - lo
    M[np.arange(n_out), lo] += 1.0 - frac
    M[np.arange(n_out), lo + 1] += frac
    return M.astype(np.float32)


def _bf16_round(a):
    """Round values to bf16 grid (kept as f32) so kernel (bf16 MXU) and reference share weights."""
    return np.asarray(jnp.asarray(a, jnp.float32).astype(jnp.bfloat16).astype(jnp.float32))


def _build_down_operators(w_down, H, W):
    """4x4 stride-2 pad-1 conv as: out = sum_i R[i] @ x_pad_packed @ G[i].
    w_down: OIHW (Co, Ci, 4, 4). Packed layouts: x_pad (Hp, Wp*Ci), out (Ho, Wo*Co)."""
    Co, Ci, KH, KW = w_down.shape
    Hp, Wp = H + 2, W + 2
    Ho, Wo = H // 2, W // 2
    R = np.zeros((KH, Ho, Hp), np.float32)
    for i in range(KH):
        for oh in range(Ho):
            R[i, oh, 2 * oh + i] = 1.0
    Sel = np.zeros((KW, Wo, Wp), np.float32)
    for j in range(KW):
        for ow in range(Wo):
            Sel[j, ow, 2 * ow + j] = 1.0
    # G[i, w*Ci+ci, ow*Co+co] = sum_j w_down[co, ci, i, j] * Sel[j, ow, w]
    G = np.einsum('ocij,jaw->iwcao', w_down, Sel).reshape(KH, Wp * Ci, Wo * Co)
    return R, np.ascontiguousarray(G)


def _build_up_operators(w_up, Mh, Mw, Ho, Wo):
    """Fused (bilinear x2, align_corners=True) + 3x3 pad-1 conv as:
       y = sum_dy Mh_shift[dy] @ (relu(xd)_packed @ F[dy]).
    w_up: OIHW (Co, Ci, 3, 3); Mh: (Hu, Ho); Mw: (Wu, Wo)."""
    Co, Ci, KH, KW = w_up.shape
    Hu, Wu = Mh.shape[0], Mw.shape[0]
    Mh_ext = np.zeros((Hu + 2, Ho), np.float32)
    Mh_ext[1:Hu + 1] = Mh
    Mw_ext = np.zeros((Wu + 2, Wo), np.float32)
    Mw_ext[1:Wu + 1] = Mw
    Mh_s = np.stack([Mh_ext[dy:dy + Hu] for dy in range(KH)])        # (3, Hu, Ho)
    Mw_s = np.stack([Mw_ext[dx:dx + Wu] for dx in range(KW)])        # (3, Wu, Wo)
    # F[dy, w*Ci+c, q*Co+co] = sum_dx w_up[co, c, dy, dx] * Mw_ext[q+dx, w]
    F = np.einsum('ocyx,xqw->ywcqo', w_up, Mw_s).reshape(KH, Wo * Ci, Wu * Co)
    return Mh_s, np.ascontiguousarray(F)


# ----------------------------- forward -----------------------------

def unet_block_forward(x_nchw, params, v=None):
    """Innermost UnetBlock forward. x: NCHW. Returns (concat([x, xu], C), meta)."""
    B, Ci, H, W = x_nchw.shape
    outer_nc = int(params["gamma"].shape[0])
    Ho, Wo = H // 2, W // 2
    Hu, Wu = 2 * Ho, 2 * Wo

    # NCHW -> NHWC at the module boundary, pad for the k=4 s=2 p=1 conv, pack (W, C) into lanes.
    x_nhwc = jnp.transpose(x_nchw, (0, 2, 3, 1))
    xp = jnp.pad(x_nhwc, ((0, 0), (1, 1), (1, 1), (0, 0)))
    xp_packed = xp.reshape(B, H + 2, (W + 2) * Ci)

    # down: fused LeakyReLU + 4x4/s2 conv (in-kernel patch handling via operator matmuls)
    xd = _down_conv(xp_packed, params["R_down"], params["G_down"])   # (B, Ho, Wo*inner_nc)

    # mid: identity submodule (innermost block), meta = None
    # TODO(synk): real SoP++ inserts an audio-visual submodule here; identity preserves forward wiring.
    xm, meta = xd, None

    # up pass 1: fused ReLU + bilinear x2 + 3x3 conv; emits pre-BN activations + per-image stats.
    y, psum, psumsq = _up_conv(xm, params["Mh_up"], params["F_up"])  # y: (B, Hu, Wu*outer_nc)

    # BatchNorm batch statistics (single pass: sum / sum-of-squares), tiny cross-image reduction.
    cnt = B * Hu * Wu
    ch_sum = psum.reshape(B, Wu, outer_nc).sum(axis=(0, 1))
    ch_sumsq = psumsq.reshape(B, Wu, outer_nc).sum(axis=(0, 1))
    mean = ch_sum / cnt
    var = ch_sumsq / cnt - mean * mean                               # biased variance (training BN)
    scale = params["gamma"] * lax.rsqrt(var + 1e-5)
    shift = params["beta"] - mean * scale
    scale_row = jnp.tile(scale, Wu)[None, :]                         # packed (q*Co + co) layout
    shift_row = jnp.tile(shift, Wu)[None, :]

    # up pass 2: apply BN scale/shift.
    xu = _bn_apply(y, scale_row, shift_row)                          # (B, Hu, Wu*outer_nc)

    # skip connection: concat([x, xu], channel); back to NCHW at the module boundary.
    xu_nhwc = xu.reshape(B, Hu, Wu, outer_nc)
    out_nhwc = jnp.concatenate([x_nhwc, xu_nhwc], axis=-1)
    return jnp.transpose(out_nhwc, (0, 3, 1, 2)), meta


# ----------------------------- pure-JAX reference (for verification) -----------------------------

def reference_forward(x, w_down, w_up, gamma, beta, Mh, Mw):
    xr = jnp.where(x >= 0, x, 0.2 * x)
    xd = lax.conv_general_dilated(
        xr, w_down, (2, 2), ((1, 1), (1, 1)),
        dimension_numbers=("NCHW", "OIHW", "NCHW"), precision=lax.Precision.HIGHEST)
    xu = jnp.maximum(xd, 0.0)
    xu = jnp.einsum("ph,qw,bchw->bcpq", Mh, Mw, xu, precision=lax.Precision.HIGHEST)
    xu = lax.conv_general_dilated(
        xu, w_up, (1, 1), ((1, 1), (1, 1)),
        dimension_numbers=("NCHW", "OIHW", "NCHW"), precision=lax.Precision.HIGHEST)
    mean = jnp.mean(xu, axis=(0, 2, 3), keepdims=True)
    var = jnp.mean((xu - mean) ** 2, axis=(0, 2, 3), keepdims=True)
    xu = (xu - mean) * lax.rsqrt(var + 1e-5)
    xu = xu * gamma.reshape(1, -1, 1, 1) + beta.reshape(1, -1, 1, 1)
    return jnp.concatenate([x, xu], axis=1)


# ----------------------------- main -----------------------------

if __name__ == "__main__":
    B, input_nc, H, W = 2, 4, 16, 16
    inner_nc = 8            # inner_input_nc (== inner_output_nc for innermost block)
    outer_nc = 4
    Ho, Wo = H // 2, W // 2
    Hu, Wu = 2 * Ho, 2 * Wo

    key = jax.random.PRNGKey(0)
    kx, k1, k2, k3, k4 = jax.random.split(key, 5)

    x = jax.random.normal(kx, (B, input_nc, H, W), jnp.float32)

    # Parameters (PyTorch OIHW layout, bias=False per the module). Weights are snapped to the bf16
    # grid so the bf16-MXU kernels and the f32 reference share identical weight values.
    w_down = _bf16_round(0.1 * jax.random.normal(k1, (inner_nc, input_nc, 4, 4), jnp.float32))
    w_up = _bf16_round(0.1 * jax.random.normal(k2, (outer_nc, inner_nc, 3, 3), jnp.float32))
    gamma = 1.0 + 0.1 * jax.random.normal(k3, (outer_nc,), jnp.float32)
    beta = 0.1 * jax.random.normal(k4, (outer_nc,), jnp.float32)

    # Separable bilinear (align_corners=True) interpolation matrices — no Kronecker blowup.
    Mh = _bf16_round(_bilinear_matrix(Hu, Ho))
    Mw = _bf16_round(_bilinear_matrix(Wu, Wo))

    R_down, G_down = _build_down_operators(np.asarray(w_down, np.float32), H, W)
    Mh_up, F_up = _build_up_operators(np.asarray(w_up, np.float32),
                                      np.asarray(Mh, np.float32),
                                      np.asarray(Mw, np.float32), Ho, Wo)

    params = dict(
        R_down=jnp.asarray(R_down, jnp.bfloat16),
        G_down=jnp.asarray(G_down, jnp.bfloat16),
        Mh_up=jnp.asarray(Mh_up, jnp.bfloat16),
        F_up=jnp.asarray(F_up, jnp.bfloat16),
        gamma=jnp.asarray(gamma, jnp.float32),
        beta=jnp.asarray(beta, jnp.float32),
    )

    out, meta = unet_block_forward(x, params)
    out = jax.block_until_ready(out)
    assert out.shape == (B, input_nc + outer_nc, H, W) and meta is None

    ref = jax.block_until_ready(reference_forward(
        x, jnp.asarray(w_down), jnp.asarray(w_up),
        jnp.asarray(gamma), jnp.asarray(beta), jnp.asarray(Mh), jnp.asarray(Mw)))

    # bf16 MXU operands (f32 accumulation) vs f32 reference: allow ~1% tolerance.
    if not np.allclose(np.asarray(out), np.asarray(ref), rtol=2e-2, atol=2e-2):
        raise AssertionError("Pallas UnetBlock output mismatch vs reference")

    print("KERNEL_OK")
</pallas_src>

<mosaic_0001>
module attributes {stable_mosaic.version = 11 : i64} {
  func.func @_down_kernel(%arg0: i32, %arg1: memref<1x18x72xf32, #tpu.memory_space<vmem>>, %arg2: memref<4x8x18xbf16, #tpu.memory_space<vmem>>, %arg3: memref<4x72x64xbf16, #tpu.memory_space<vmem>>, %arg4: memref<1x8x64xf32, #tpu.memory_space<vmem>>) attributes {dimension_semantics = [#tpu.dimension_semantics<parallel>], iteration_bounds = array<i64: 2>, scalar_prefetch = 0 : i64, scratch_operands = 0 : i64, tpu.core_type = #tpu.core_type<tc>, window_params = [{transform_indices = @transform_0, window_bounds = array<i64: 1, 18, 72>}, {pipeline_mode = #tpu.pipeline_mode<synchronous>, transform_indices = @transform_1, window_bounds = array<i64: 4, 8, 18>}, {pipeline_mode = #tpu.pipeline_mode<synchronous>, transform_indices = @transform_2, window_bounds = array<i64: 4, 72, 64>}, {transform_indices = @transform_3, window_bounds = array<i64: 1, 8, 64>}]} {
    %c0 = arith.constant 0 : index
    %c0_0 = arith.constant 0 : index
    %c0_1 = arith.constant 0 : index
    %0 = vector.load %arg1[%c0, %c0_0, %c0_1] : memref<1x18x72xf32, #tpu.memory_space<vmem>>, vector<1x18x72xf32>
    %1 = vector.shape_cast %0 : vector<1x18x72xf32> to vector<18x72xf32>
    %cst = arith.constant 0.000000e+00 : f32
    %2 = vector.broadcast %cst : f32 to vector<18x72xf32>
    %3 = arith.cmpf oge, %1, %2 : vector<18x72xf32>
    %cst_2 = arith.constant 2.000000e-01 : f32
    %4 = vector.broadcast %cst_2 : f32 to vector<18x72xf32>
    %5 = arith.mulf %4, %1 : vector<18x72xf32>
    %6 = arith.select %3, %1, %5 : vector<18x72xi1>, vector<18x72xf32>
    %7 = arith.truncf %6 : vector<18x72xf32> to vector<18x72xbf16>
    %c0_3 = arith.constant 0 : index
    %c0_4 = arith.constant 0 : index
    %c0_5 = arith.constant 0 : index
    %8 = vector.load %arg2[%c0_3, %c0_4, %c0_5] : memref<4x8x18xbf16, #tpu.memory_space<vmem>>, vector<1x8x18xbf16>
    %9 = vector.shape_cast %8 : vector<1x8x18xbf16> to vector<8x18xbf16>
    %cst_6 = arith.constant dense<0.000000e+00> : vector<8x72xf32>
    %10 = tpu.matmul %9, %7, %cst_6 {dimension_numbers = #tpu.dot_dimension_numbers<[1], [0], [0], [1], [0, 0, 1, 1], [], []>} : vector<8x18xbf16>, vector<18x72xbf16>, vector<8x72xf32> -> vector<8x72xf32>
    %11 = arith.truncf %10 : vector<8x72xf32> to vector<8x72xbf16>
    %c0_7 = arith.constant 0 : index
    %c0_8 = arith.constant 0 : index
    %c0_9 = arith.constant 0 : index
    %12 = vector.load %arg3[%c0_7, %c0_8, %c0_9] : memref<4x72x64xbf16, #tpu.memory_space<vmem>>, vector<1x72x64xbf16>
    %13 = vector.shape_cast %12 : vector<1x72x64xbf16> to vector<72x64xbf16>
    %cst_10 = arith.constant dense<0.000000e+00> : vector<8x64xf32>
    %14 = tpu.matmul %11, %13, %cst_10 {dimension_numbers = #tpu.dot_dimension_numbers<[1], [0], [0], [1], [0, 0, 1, 1], [], []>} : vector<8x72xbf16>, vector<72x64xbf16>, vector<8x64xf32> -> vector<8x64xf32>
    %c1 = arith.constant 1 : index
    %c0_11 = arith.constant 0 : index
    %c0_12 = arith.constant 0 : index
    %15 = vector.load %arg2[%c1, %c0_11, %c0_12] : memref<4x8x18xbf16, #tpu.memory_space<vmem>>, vector<1x8x18xbf16>
    %16 = vector.shape_cast %15 : vector<1x8x18xbf16> to vector<8x18xbf16>
    %cst_13 = arith.constant dense<0.000000e+00> : vector<8x72xf32>
    %17 = tpu.matmul %16, %7, %cst_13 {dimension_numbers = #tpu.dot_dimension_numbers<[1], [0], [0], [1], [0, 0, 1, 1], [], []>} : vector<8x18xbf16>, vector<18x72xbf16>, vector<8x72xf32> -> vector<8x72xf32>
    %18 = arith.truncf %17 : vector<8x72xf32> to vector<8x72xbf16>
    %c1_14 = arith.constant 1 : index
    %c0_15 = arith.constant 0 : index
    %c0_16 = arith.constant 0 : index
    %19 = vector.load %arg3[%c1_14, %c0_15, %c0_16] : memref<4x72x64xbf16, #tpu.memory_space<vmem>>, vector<1x72x64xbf16>
    %20 = vector.shape_cast %19 : vector<1x72x64xbf16> to vector<72x64xbf16>
    %cst_17 = arith.constant dense<0.000000e+00> : vector<8x64xf32>
    %21 = tpu.matmul %18, %20, %cst_17 {dimension_numbers = #tpu.dot_dimension_numbers<[1], [0], [0], [1], [0, 0, 1, 1], [], []>} : vector<8x72xbf16>, vector<72x64xbf16>, vector<8x64xf32> -> vector<8x64xf32>
    %22 = arith.addf %14, %21 : vector<8x64xf32>
    %c2 = arith.constant 2 : index
    %c0_18 = arith.constant 0 : index
    %c0_19 = arith.constant 0 : index
    %23 = vector.load %arg2[%c2, %c0_18, %c0_19] : memref<4x8x18xbf16, #tpu.memory_space<vmem>>, vector<1x8x18xbf16>
    %24 = vector.shape_cast %23 : vector<1x8x18xbf16> to vector<8x18xbf16>
    %cst_20 = arith.constant dense<0.000000e+00> : vector<8x72xf32>
    %25 = tpu.matmul %24, %7, %cst_20 {dimension_numbers = #tpu.dot_dimension_numbers<[1], [0], [0], [1], [0, 0, 1, 1], [], []>} : vector<8x18xbf16>, vector<18x72xbf16>, vector<8x72xf32> -> vector<8x72xf32>
    %26 = arith.truncf %25 : vector<8x72xf32> to vector<8x72xbf16>
    %c2_21 = arith.constant 2 : index
    %c0_22 = arith.constant 0 : index
    %c0_23 = arith.constant 0 : index
    %27 = vector.load %arg3[%c2_21, %c0_22, %c0_23] : memref<4x72x64xbf16, #tpu.memory_space<vmem>>, vector<1x72x64xbf16>
    %28 = vector.shape_cast %27 : vector<1x72x64xbf16> to vector<72x64xbf16>
    %cst_24 = arith.constant dense<0.000000e+00> : vector<8x64xf32>
    %29 = tpu.matmul %26, %28, %cst_24 {dimension_numbers = #tpu.dot_dimension_numbers<[1], [0], [0], [1], [0, 0, 1, 1], [], []>} : vector<8x72xbf16>, vector<72x64xbf16>, vector<8x64xf32> -> vector<8x64xf32>
    %30 = arith.addf %22, %29 : vector<8x64xf32>
    %c3 = arith.constant 3 : index
    %c0_25 = arith.constant 0 : index
    %c0_26 = arith.constant 0 : index
    %31 = vector.load %arg2[%c3, %c0_25, %c0_26] : memref<4x8x18xbf16, #tpu.memory_space<vmem>>, vector<1x8x18xbf16>
    %32 = vector.shape_cast %31 : vector<1x8x18xbf16> to vector<8x18xbf16>
    %cst_27 = arith.constant dense<0.000000e+00> : vector<8x72xf32>
    %33 = tpu.matmul %32, %7, %cst_27 {dimension_numbers = #tpu.dot_dimension_numbers<[1], [0], [0], [1], [0, 0, 1, 1], [], []>} : vector<8x18xbf16>, vector<18x72xbf16>, vector<8x72xf32> -> vector<8x72xf32>
    %34 = arith.truncf %33 : vector<8x72xf32> to vector<8x72xbf16>
    %c3_28 = arith.constant 3 : index
    %c0_29 = arith.constant 0 : index
    %c0_30 = arith.constant 0 : index
    %35 = vector.load %arg3[%c3_28, %c0_29, %c0_30] : memref<4x72x64xbf16, #tpu.memory_space<vmem>>, vector<1x72x64xbf16>
    %36 = vector.shape_cast %35 : vector<1x72x64xbf16> to vector<72x64xbf16>
    %cst_31 = arith.constant dense<0.000000e+00> : vector<8x64xf32>
    %37 = tpu.matmul %34, %36, %cst_31 {dimension_numbers = #tpu.dot_dimension_numbers<[1], [0], [0], [1], [0, 0, 1, 1], [], []>} : vector<8x72xbf16>, vector<72x64xbf16>, vector<8x64xf32> -> vector<8x64xf32>
    %38 = arith.addf %30, %37 : vector<8x64xf32>
    %c0_32 = arith.constant 0 : index
    %c0_33 = arith.constant 0 : index
    %c0_34 = arith.constant 0 : index
    %39 = vector.load %arg4[%c0_32, %c0_33, %c0_34] : memref<1x8x64xf32, #tpu.memory_space<vmem>>, vector<1x8x64xf32>
    %40 = vector.shape_cast %39 : vector<1x8x64xf32> to vector<8x64xf32>
    %41 = vector.shape_cast %38 : vector<8x64xf32> to vector<1x8x64xf32>
    tpu.vector_store %arg4[%c0_32, %c0_33, %c0_34], %41 {strides = array<i32>} : memref<1x8x64xf32, #tpu.memory_space<vmem>>, vector<1x8x64xf32>,
    return
  }
  func.func @transform_0(%arg0: i32) -> (i32, i32, i32) {
    %c0_i32 = arith.constant 0 : i32
    %c0_i32_0 = arith.constant 0 : i32
    %c0_i32_1 = arith.constant 0 : i32
    return %arg0, %c0_i32, %c0_i32_0 : i32, i32, i32
  }
  func.func @transform_1(%arg0: i32) -> (i32, i32, i32) {
    %c0_i32 = arith.constant 0 : i32
    %c0_i32_0 = arith.constant 0 : i32
    %c0_i32_1 = arith.constant 0 : i32
    %c0_i32_2 = arith.constant 0 : i32
    return %c0_i32, %c0_i32_0, %c0_i32_1 : i32, i32, i32
  }
  func.func @transform_2(%arg0: i32) -> (i32, i32, i32) {
    %c0_i32 = arith.constant 0 : i32
    %c0_i32_0 = arith.constant 0 : i32
    %c0_i32_1 = arith.constant 0 : i32
    %c0_i32_2 = arith.constant 0 : i32
    return %c0_i32, %c0_i32_0, %c0_i32_1 : i32, i32, i32
  }
  func.func @transform_3(%arg0: i32) -> (i32, i32, i32) {
    %c0_i32 = arith.constant 0 : i32
    %c0_i32_0 = arith.constant 0 : i32
    %c0_i32_1 = arith.constant 0 : i32
    return %arg0, %c0_i32, %c0_i32_0 : i32, i32, i32
  }
}

</mosaic_0001>

<llo_original>
// kernel: tpu_custom_call.1
$region0: #{tpu_custom_call.1}
  #allocation0 [shape = 'u32[]', space=smem, size = 0x4, offset = 0x4, fixed_abs, tag = 'smem constant byte address 0x4 - core index']
  #allocation1 [shape = 'u32[72,128]{1,0:T(1,128)}', space=vmem, size = 0x9000, scoped, tag = 'internal scratch']
  %s0 = inlined_call_operand.vmem [shape: f32[2,18,72], index: 0, kind: input, shape index: {}]
  %s1 = inlined_call_operand.vmem [shape: bf16[4,8,18], index: 1, kind: input, shape index: {}]
  %s2 = inlined_call_operand.vmem [shape: bf16[4,72,64], index: 2, kind: input, shape index: {}]
  %s3 = inlined_call_operand.hbm [shape: f32[2,8,64], index: 3, kind: output, shape index: {}]
  %s4 = sld [smem:[#allocation0]]
  $region45: #{tpu_custom_call.1} parent=0
    _
  %s6 = ssub.s32 1, %s4
  %s7 = scalar_select 0, %s6, %s4
  $region1: #{tpu_custom_call.1} parent=0
    #allocation2 [shape = 'u8[8192]{0}', space=vmem, size = 0x2000, scoped, tag = 'output window, operand 0']
    #allocation3 [shape = 's32[2]{0}', space=sflag, size = 0x8, scoped, tag = 'scoped memory for tpu_custom_call.1']
    %8 = vsyncpa [#allocation3], 0
    %s9 = scalar_lea.sflag [#allocation3], 1
    %10 = vsyncpa %s9, 0
    loop: start=0, step=1, limit=4
    $region2: #{tpu_custom_call.1} parent=1 // loop_pre_header
      _
    $region3: #{tpu_custom_call.1} parent=1 // loop_header
      %s12 = sphi 0, %s16
      %p13 = scmp.ge.s32.totalorder %s12, 4
      %s22 = sphi 0, %s24
      %s25 = sphi 0, %s22
      %s26 = sphi 0, %s25
      %s42 = sphi 0, %s26
      %s46 = sphi 0, %s46
      %s48 = sphi 0, %s46
      %s49 = sphi 0, %s48
      %s63 = sphi 0, %s49
      %s67 = sphi 0, %s67
      %s69 = sphi 0, %s67
      %s70 = sphi 0, %s69
      %s84 = sphi 0, %s70
      %s90 = sphi 0, %s92
      %s93 = sphi 0, %s90
      %s94 = sphi 0, %s93
      %s110 = sphi 0, %s94
    $region4: #{tpu_custom_call.1} parent=1 // loop_header_branch
      %15 = sbr.rel (%p13) target = $region8
    $region5: #{tpu_custom_call.1} parent=1 // loop_body
      %s17 = ssub.s32 %s12, 1
      %s18 = ssub.s32 %s12, 2
      %s19 = sadd.s32 %s12, 1
      %s20 = ssub.s32 %s12, %s19
      %p21 = scmp.eq.s32.totalorder %s20, 0
      %s23 = sadd.s32 %s22, 1
      %s24 = scalar_select %p21, %s22, %s23
      %p27 = pneg %p21
      %p28 = scmp.eq.s32.totalorder %s12, 1
      %p29 = por %p27, %p28
      %p30 = scmp.ne.s32.totalorder %s22, %s25
      %p31 = scmp.eq.s32.totalorder %s12, 0
      %p32 = por %p30, %p31
      %p33 = scmp.ne.s32.totalorder %s22, %s25
      %p34 = scmp.eq.s32.totalorder %s17, 1
      %p35 = por %p33, %p34
      %p36 = scmp.ne.s32.totalorder %s25, %s26
      %p37 = scmp.eq.s32.totalorder %s17, 0
      %p38 = por %p36, %p37
      %p39 = scmp.ne.s32.totalorder %s25, %s26
      %p40 = scmp.eq.s32.totalorder %s18, 1
      %p41 = por %p39, %p40
      %p43 = scmp.ne.s32.totalorder %s26, %s42
      %p44 = scmp.eq.s32.totalorder %s18, 0
      %p45 = por %p43, %p44
      %s47 = sadd.s32 %s46, 1
      %p50 = scmp.eq.s32.totalorder %s12, 1
      %p51 = scmp.ne.s32.totalorder %s46, %s48
      %p52 = scmp.eq.s32.totalorder %s12, 0
      %p53 = por %p51, %p52
      %p54 = scmp.ne.s32.totalorder %s46, %s48
      %p55 = scmp.eq.s32.totalorder %s17, 1
      %p56 = por %p54, %p55
      %p57 = scmp.ne.s32.totalorder %s48, %s49
      %p58 = scmp.eq.s32.totalorder %s17, 0
      %p59 = por %p57, %p58
      %p60 = scmp.ne.s32.totalorder %s48, %s49
      %p61 = scmp.eq.s32.totalorder %s18, 1
      %p62 = por %p60, %p61
      %p64 = scmp.ne.s32.totalorder %s49, %s63
      %p65 = scmp.eq.s32.totalorder %s18, 0
      %p66 = por %p64, %p65
      %s68 = sadd.s32 %s67, 1
      %p71 = scmp.eq.s32.totalorder %s12, 1
      %p72 = scmp.ne.s32.totalorder %s67, %s69
      %p73 = scmp.eq.s32.totalorder %s12, 0
      %p74 = por %p72, %p73
      %p75 = scmp.ne.s32.totalorder %s67, %s69
      %p76 = scmp.eq.s32.totalorder %s17, 1
      %p77 = por %p75, %p76
      %p78 = scmp.ne.s32.totalorder %s69, %s70
      %p79 = scmp.eq.s32.totalorder %s17, 0
      %p80 = por %p78, %p79
      %p81 = scmp.ne.s32.totalorder %s69, %s70
      %p82 = scmp.eq.s32.totalorder %s18, 1
      %p83 = por %p81, %p82
      %p85 = scmp.ne.s32.totalorder %s70, %s84
      %p86 = scmp.eq.s32.totalorder %s18, 0
      %p87 = por %p85, %p86
      %s88 = ssub.s32 %s12, %s19
      %p89 = scmp.eq.s32.totalorder %s88, 0
      %s91 = sadd.s32 %s90, 1
      %s92 = scalar_select %p89, %s90, %s91
      %p95 = pneg %p89
      %p96 = scmp.eq.s32.totalorder %s12, 1
      %p97 = por %p95, %p96
      %p98 = scmp.ne.s32.totalorder %s90, %s93
      %p99 = scmp.eq.s32.totalorder %s12, 0
      %p100 = por %p98, %p99
      %p101 = scmp.ne.s32.totalorder %s90, %s93
      %p102 = scmp.eq.s32.totalorder %s17, 1
      %p103 = por %p101, %p102
      %p104 = scmp.ne.s32.totalorder %s93, %s94
      %p105 = scmp.eq.s32.totalorder %s17, 0
      %p106 = por %p104, %p105
      %p107 = scmp.ne.s32.totalorder %s93, %s94
      %p108 = scmp.eq.s32.totalorder %s18, 1
      %p109 = por %p107, %p108
      %p111 = scmp.ne.s32.totalorder %s94, %s110
      %p112 = scmp.eq.s32.totalorder %s18, 0
      %p113 = por %p111, %p112
      %p114 = scmp.le.s32.totalorder 1, %s12
      %p115 = scmp.lt.s32.totalorder %s12, 3
      %p116 = pnand %p114, %p115
      %p117 = pneg %p116
      // Predicated region
      $region9: #{tpu_custom_call.1} parent=5 // pred_check
        _
      $region10: #{tpu_custom_call.1} parent=5 // pred_check_branch
        %119 = sbr.rel (%p116) target = $region12
      $region11: #{tpu_custom_call.1} parent=5 // pred_region
        %s120 = ssub.s32 %s12, 1
        // Predicated region
        $region13: #{tpu_custom_call.1} parent=11 // pred_check
          %p121 = pneg %p59
        $region14: #{tpu_custom_call.1} parent=11 // pred_check_branch
          %123 = sbr.rel (%p121) target = $region16
        $region15: #{tpu_custom_call.1} parent=11 // pred_region
          _
        $region16: #{tpu_custom_call.1} parent=11 // pred_fallthru
          _
        // Predicated region
        $region17: #{tpu_custom_call.1} parent=11 // pred_check
          %p124 = pneg %p80
        $region18: #{tpu_custom_call.1} parent=11 // pred_check_branch
          %126 = sbr.rel (%p124) target = $region20
        $region19: #{tpu_custom_call.1} parent=11 // pred_region
          _
        $region20: #{tpu_custom_call.1} parent=11 // pred_fallthru
          _
      $region12: #{tpu_custom_call.1} parent=5 // pred_fallthru
        _
      %p127 = scmp.lt.s32.totalorder %s12, 2
      // Predicated region
      $region21: #{tpu_custom_call.1} parent=5 // pred_check
        %p128 = pneg %p127
      $region22: #{tpu_custom_call.1} parent=5 // pred_check_branch
        %130 = sbr.rel (%p128) target = $region24
      $region23: #{tpu_custom_call.1} parent=5 // pred_region
        // Predicated region
        $region25: #{tpu_custom_call.1} parent=23 // pred_check
          %p131 = pneg %p32
        $region26: #{tpu_custom_call.1} parent=23 // pred_check_branch
          %133 = sbr.rel (%p131) target = $region28
        $region27: #{tpu_custom_call.1} parent=23 // pred_region
          %p134 = scmp.lt.s32.totalorder %s12, 1
          %s135 = scalar_select %p134, %s12, 1
          %s136 = smul.addr %s135, 3
          %s137 = smul.addr %s136, 8
          %s138 = scalar_lea.vmem %s0, %s137
        $region28: #{tpu_custom_call.1} parent=23 // pred_fallthru
          _
      $region24: #{tpu_custom_call.1} parent=5 // pred_fallthru
        _
      %p139 = scmp.le.s32.totalorder 1, %s12
      %p140 = scmp.lt.s32.totalorder %s12, 3
      %p141 = pnand %p139, %p140
      %p142 = pneg %p141
      // Predicated region
      $region29: #{tpu_custom_call.1} parent=5 // pred_check
        _
      $region30: #{tpu_custom_call.1} parent=5 // pred_check_branch
        %144 = sbr.rel (%p141) target = $region32
      $region31: #{tpu_custom_call.1} parent=5 // pred_region
        %s145 = ssub.s32 %s12, 1
        %p146 = scmp.lt.s32.totalorder %s17, 1
        %s147 = scalar_select %p146, %s17, 1
        %s148 = smul.addr %s147, 3
        %s149 = smul.addr %s148, 8
        %s150 = scalar_lea.vmem %s0, %s149
        %p151 = pneg %p38
        %p152 = pneg %p35
        %p153 = pneg %p59
        %p154 = pneg %p56
        %p155 = pneg %p80
        %p156 = pneg %p77
        %p157 = pneg %p106
        %p158 = pneg %p103
        %s159 = sand.u32 %s93, 1
        %s160 = scalar_lea.sflag [#allocation3], %s159
        %s161 = sand.u32 %s93, 1
        %s162 = smul.addr %s161, 8
        %s163 = scalar_lea.vmem [#allocation2], %s162
        %p164 = scmp.lt.s32.totalorder %s17, 1
        %s165 = scalar_select %p164, %s17, 1
        %s166 = smul.addr %s165, 3
        %s167 = smul.addr %s166, 8
        %s168 = scalar_lea.vmem %s0, %s167
        %v170 = vld [vmem:[%s168] sm:$0xff]
        %v171 = vld [vmem:[%s168 + $0x8] sm:$0xff]
        %v172 = vld [vmem:[%s168 + $0x10] sm:$0x3]
        %vm173 = vcmp.ge.f32.partialorder %v170, 0.0
        %vm174 = vcmp.ge.f32.partialorder %v171, 0.0
        %vm175 = vcmp.ge.f32.partialorder %v172, 0.0
        %v176 = vmul.f32 %v170, 0.2
        %v177 = vmul.f32 %v171, 0.2
        %v178 = vmul.f32 %v172, 0.2
        %v179 = vsel %vm173, %v170, %v176
        %v180 = vsel %vm174, %v171, %v177
        %v181 = vsel %vm175, %v172, %v178
        %v182 = vpack.c.bf16 %v180, %v179
        %v183 = vpack.c.bf16 %v181, %v181
        %v184 = vld [vmem:[%s1] sm:$0xf]
        %vm185 = vcmask 146432
        %v187 = vsel %vm185, %v184, 0
        %vm189 = vcmask 1040384
        %v191 = vsel %vm189, %v183, 0
        %193 = vmatpush.bf16.msra.mxu0 0
        %194 = vmatpush.bf16.msra.mxu0 0
        %195 = vmatpush.bf16.msra.mxu0 0
        %196 = vmatpush.bf16.msra.mxu0 0
        %197 = vmatpush.bf16.msra.mxu0 0
        %198 = vmatpush.bf16.msra.mxu0 0
        %199 = vmatpush.bf16.msra.mxu0 %v191
        %200 = vmatpush.bf16.msra.mxu0 %v182
        %201 = vmatmul.bf16.gmra.mxu0 %v187
        %v202 = vpop.f32.mrf.mxu0
        %v203 = vadd.f32 0.0, %v202
        %v204 = vpop.f32.mrf.mxu0
        %205 = vdwg.mxu0
        %v206 = vpack.c.bf16 %v203, %v203
        %v207 = vld [vmem:[%s2] sm:$0xf]
        %v208 = vld [vmem:[%s2 + $0x4] sm:$0xf]
        %v209 = vld [vmem:[%s2 + $0x8] sm:$0xf]
        %v210 = vld [vmem:[%s2 + $0xc] sm:$0xf]
        %v211 = vld [vmem:[%s2 + $0x10] sm:$0xf]
        %v212 = vld [vmem:[%s2 + $0x14] sm:$0xf]
        %v213 = vld [vmem:[%s2 + $0x18] sm:$0xf]
        %v214 = vld [vmem:[%s2 + $0x1c] sm:$0xf]
        %v215 = vld [vmem:[%s2 + $0x20] sm:$0xf]
        %s216 = scalar_lea.vmem %s1, 4
        %v217 = vld [vmem:[%s216] sm:$0xf]
        %v219 = vsel %vm185, %v217, 0
        %221 = vmatpush.bf16.msra.mxu0 0
        %222 = vmatpush.bf16.msra.mxu0 0
        %223 = vmatpush.bf16.msra.mxu0 0
        %224 = vmatpush.bf16.msra.mxu0 0
        %225 = vmatpush.bf16.msra.mxu0 0
        %226 = vmatpush.bf16.msra.mxu0 0
        %227 = vmatpush.bf16.msra.mxu0 %v191
        %228 = vmatpush.bf16.msra.mxu0 %v182
        %229 = vmatmul.bf16.gmra.mxu0 %v219
        %v230 = vpop.f32.mrf.mxu0
        %v231 = vadd.f32 0.0, %v230
        %v232 = vpop.f32.mrf.mxu0
        %233 = vdwg.mxu0
        %v234 = vpack.c.bf16 %v231, %v231
        %s235 = scalar_lea.vmem %s2, 36
        %v236 = vld [vmem:[%s235] sm:$0xf]
        %v237 = vld [vmem:[%s235 + $0x4] sm:$0xf]
        %v238 = vld [vmem:[%s235 + $0x8] sm:$0xf]
        %v239 = vld [vmem:[%s235 + $0xc] sm:$0xf]
        %v240 = vld [vmem:[%s235 + $0x10] sm:$0xf]
        %v241 = vld [vmem:[%s235 + $0x14] sm:$0xf]
        %v242 = vld [vmem:[%s235 + $0x18] sm:$0xf]
        %v243 = vld [vmem:[%s235 + $0x1c] sm:$0xf]
        %v244 = vld [vmem:[%s235 + $0x20] sm:$0xf]
        %v254 = vunpack.c.l.b16 %v236
        %v255 = vunpack.c.l.b16 %v237
        %v256 = vunpack.c.l.b16 %v238
        %v257 = vunpack.c.l.b16 %v239
        %v258 = vunpack.c.l.b16 %v240
        %v259 = vunpack.c.l.b16 %v241
        %v260 = vunpack.c.l.b16 %v242
        %v261 = vunpack.c.l.b16 %v243
        %v262 = vunpack.c.l.b16 %v244
        %v263 = vpack.c.b16 %v255, %v254
        %v264 = vpack.c.b16 %v257, %v256
        %v265 = vpack.c.b16 %v259, %v258
        %v266 = vpack.c.b16 %v261, %v260
        %v267 = vpack.c.b16 %v262, %v262
        %vm272 = vcmask 588800
        %v274 = vsel %vm272, %v234, 0
        %vm276 = vcmask 1043456
        %v278 = vsel %vm276, %v267, 0
        %280 = vmatpush.bf16.msra.mxu0 0
        %281 = vmatpush.bf16.msra.mxu0 0
        %282 = vmatpush.bf16.msra.mxu0 0
        %283 = vmatpush.bf16.msra.mxu0 %v278
        %284 = vmatpush.bf16.msra.mxu0 %v266
        %285 = vmatpush.bf16.msra.mxu0 %v265
        %286 = vmatpush.bf16.msra.mxu0 %v264
        %287 = vmatpush.bf16.msra.mxu0 %v263
        %288 = vmatmul.bf16.gmra.mxu0 %v274
        %v289 = vpop.f32.mrf.mxu0
        %v290 = vadd.f32 0.0, %v289
        %v291 = vpop.f32.mrf.mxu0
        %292 = vdwg.mxu0
        %v302 = vunpack.c.l.b16 %v207
        %v303 = vunpack.c.l.b16 %v208
        %v304 = vunpack.c.l.b16 %v209
        %v305 = vunpack.c.l.b16 %v210
        %v306 = vunpack.c.l.b16 %v211
        %v307 = vunpack.c.l.b16 %v212
        %v308 = vunpack.c.l.b16 %v213
        %v309 = vunpack.c.l.b16 %v214
        %v310 = vunpack.c.l.b16 %v215
        %v311 = vpack.c.b16 %v303, %v302
        %v312 = vpack.c.b16 %v305, %v304
        %v313 = vpack.c.b16 %v307, %v306
        %v314 = vpack.c.b16 %v309, %v308
        %v315 = vpack.c.b16 %v310, %v310
        %v321 = vsel %vm272, %v206, 0
        %v324 = vsel %vm276, %v315, 0
        %326 = vmatpush.bf16.msra.mxu0 0
        %327 = vmatpush.bf16.msra.mxu0 0
        %328 = vmatpush.bf16.msra.mxu0 0
        %329 = vmatpush.bf16.msra.mxu0 %v324
        %330 = vmatpush.bf16.msra.mxu0 %v314
        %331 = vmatpush.bf16.msra.mxu0 %v313
        %332 = vmatpush.bf16.msra.mxu0 %v312
        %333 = vmatpush.bf16.msra.mxu0 %v311
        %334 = vmatmul.bf16.gmra.mxu0 %v321
        %v335 = vpop.f32.mrf.mxu0
        %v336 = vadd.f32 %v290, %v335
        %v337 = vpop.f32.mrf.mxu0
        %338 = vdwg.mxu0
        %s339 = scalar_lea.vmem %s1, 8
        %v340 = vld [vmem:[%s339] sm:$0xf]
        %v342 = vsel %vm185, %v340, 0
        %344 = vmatpush.bf16.msra.mxu0 0
        %345 = vmatpush.bf16.msra.mxu0 0
        %346 = vmatpush.bf16.msra.mxu0 0
        %347 = vmatpush.bf16.msra.mxu0 0
        %348 = vmatpush.bf16.msra.mxu0 0
        %349 = vmatpush.bf16.msra.mxu0 0
        %350 = vmatpush.bf16.msra.mxu0 %v191
        %351 = vmatpush.bf16.msra.mxu0 %v182
        %352 = vmatmul.bf16.gmra.mxu0 %v342
        %v353 = vpop.f32.mrf.mxu0
        %v354 = vadd.f32 0.0, %v353
        %v355 = vpop.f32.mrf.mxu0
        %356 = vdwg.mxu0
        %v357 = vpack.c.bf16 %v354, %v354
        %s358 = scalar_lea.vmem %s2, 72
        %v359 = vld [vmem:[%s358] sm:$0xf]
        %v360 = vld [vmem:[%s358 + $0x4] sm:$0xf]
        %v361 = vld [vmem:[%s358 + $0x8] sm:$0xf]
        %v362 = vld [vmem:[%s358 + $0xc] sm:$0xf]
        %v363 = vld [vmem:[%s358 + $0x10] sm:$0xf]
        %v364 = vld [vmem:[%s358 + $0x14] sm:$0xf]
        %v365 = vld [vmem:[%s358 + $0x18] sm:$0xf]
        %v366 = vld [vmem:[%s358 + $0x1c] sm:$0xf]
        %v367 = vld [vmem:[%s358 + $0x20] sm:$0xf]
        %v377 = vunpack.c.l.b16 %v359
        %v378 = vunpack.c.l.b16 %v360
        %v379 = vunpack.c.l.b16 %v361
        %v380 = vunpack.c.l.b16 %v362
        %v381 = vunpack.c.l.b16 %v363
        %v382 = vunpack.c.l.b16 %v364
        %v383 = vunpack.c.l.b16 %v365
        %v384 = vunpack.c.l.b16 %v366
        %v385 = vunpack.c.l.b16 %v367
        %v386 = vpack.c.b16 %v378, %v377
        %v387 = vpack.c.b16 %v380, %v379
        %v388 = vpack.c.b16 %v382, %v381
        %v389 = vpack.c.b16 %v384, %v383
        %v390 = vpack.c.b16 %v385, %v385
        %v396 = vsel %vm272, %v357, 0
        %v399 = vsel %vm276, %v390, 0
        %401 = vmatpush.bf16.msra.mxu0 0
        %402 = vmatpush.bf16.msra.mxu0 0
        %403 = vmatpush.bf16.msra.mxu0 0
        %404 = vmatpush.bf16.msra.mxu0 %v399
        %405 = vmatpush.bf16.msra.mxu0 %v389
        %406 = vmatpush.bf16.msra.mxu0 %v388
        %407 = vmatpush.bf16.msra.mxu0 %v387
        %408 = vmatpush.bf16.msra.mxu0 %v386
        %409 = vmatmul.bf16.gmra.mxu0 %v396
        %v410 = vpop.f32.mrf.mxu0
        %v411 = vadd.f32 0.0, %v410
        %v412 = vpop.f32.mrf.mxu0
        %413 = vdwg.mxu0
        %v414 = vadd.f32 %v336, %v411
        %s415 = scalar_lea.vmem %s1, 12
        %v416 = vld [vmem:[%s415] sm:$0xf]
        %v418 = vsel %vm185, %v416, 0
        %420 = vmatpush.bf16.msra.mxu0 0
        %421 = vmatpush.bf16.msra.mxu0 0
        %422 = vmatpush.bf16.msra.mxu0 0
        %423 = vmatpush.bf16.msra.mxu0 0
        %424 = vmatpush.bf16.msra.mxu0 0
        %425 = vmatpush.bf16.msra.mxu0 0
        %426 = vmatpush.bf16.msra.mxu0 %v191
        %427 = vmatpush.bf16.msra.mxu0 %v182
        %428 = vmatmul.bf16.gmra.mxu0 %v418
        %v429 = vpop.f32.mrf.mxu0
        %v430 = vadd.f32 0.0, %v429
        %v431 = vpop.f32.mrf.mxu0
        %432 = vdwg.mxu0
        %v433 = vpack.c.bf16 %v430, %v430
        %s434 = scalar_lea.vmem %s2, 108
        %v435 = vld [vmem:[%s434] sm:$0xf]
        %v436 = vld [vmem:[%s434 + $0x4] sm:$0xf]
        %v437 = vld [vmem:[%s434 + $0x8] sm:$0xf]
        %v438 = vld [vmem:[%s434 + $0xc] sm:$0xf]
        %v439 = vld [vmem:[%s434 + $0x10] sm:$0xf]
        %v440 = vld [vmem:[%s434 + $0x14] sm:$0xf]
        %v441 = vld [vmem:[%s434 + $0x18] sm:$0xf]
        %v442 = vld [vmem:[%s434 + $0x1c] sm:$0xf]
        %v443 = vld [vmem:[%s434 + $0x20] sm:$0xf]
        %v453 = vunpack.c.l.b16 %v435
        %v454 = vunpack.c.l.b16 %v436
        %v455 = vunpack.c.l.b16 %v437
        %v456 = vunpack.c.l.b16 %v438
        %v457 = vunpack.c.l.b16 %v439
        %v458 = vunpack.c.l.b16 %v440
        %v459 = vunpack.c.l.b16 %v441
        %v460 = vunpack.c.l.b16 %v442
        %v461 = vunpack.c.l.b16 %v443
        %v462 = vpack.c.b16 %v454, %v453
        %v463 = vpack.c.b16 %v456, %v455
        %v464 = vpack.c.b16 %v458, %v457
        %v465 = vpack.c.b16 %v460, %v459
        %v466 = vpack.c.b16 %v461, %v461
        %v472 = vsel %vm272, %v433, 0
        %v475 = vsel %vm276, %v466, 0
        %477 = vmatpush.bf16.msra.mxu0 0
        %478 = vmatpush.bf16.msra.mxu0 0
        %479 = vmatpush.bf16.msra.mxu0 0
        %480 = vmatpush.bf16.msra.mxu0 %v475
        %481 = vmatpush.bf16.msra.mxu0 %v465
        %482 = vmatpush.bf16.msra.mxu0 %v464
        %483 = vmatpush.bf16.msra.mxu0 %v463
        %484 = vmatpush.bf16.msra.mxu0 %v462
        %485 = vmatmul.bf16.gmra.mxu0 %v472
        %v486 = vpop.f32.mrf.mxu0
        %v487 = vadd.f32 0.0, %v486
        %v488 = vpop.f32.mrf.mxu0
        %489 = vdwg.mxu0
        %v490 = vadd.f32 %v414, %v487
        %vm491 = vcmask 523264
        %492 = vst.msk [vmem:[%s163] sm:$0xff] %vm491, %v490
        %s493 = sand.u32 %s93, 1
        %s494 = scalar_lea.sflag [#allocation3], %s493
        %s495 = sand.u32 %s93, 1
        %s496 = smul.addr %s495, 8
        %s497 = scalar_lea.vmem [#allocation2], %s496
        // Predicated region
        $region33: #{tpu_custom_call.1} parent=31 // pred_check
          %p498 = pneg %p103
        $region34: #{tpu_custom_call.1} parent=31 // pred_check_branch
          %500 = sbr.rel (%p498) target = $region36
        $region35: #{tpu_custom_call.1} parent=31 // pred_region
          %502 = vsyncadd %s494, 0
          %s503 = smul.addr %s17, 8
          %s504 = scalar_lea.hbm %s3, %s503
          %s506 = sshll.u32 %s497, 4
          %s507 = int_to_ptr.vmem [resolvable:$true] %s506
          %s508 = sshll.u32 %s504, 4
          %s509 = int_to_ptr.hbm [resolvable:$true] %s508
          %511 = dma.vmem_to_hbm [thread:$0]  %s507, 128, %s509, %s494
        $region36: #{tpu_custom_call.1} parent=31 // pred_fallthru
          _
      $region32: #{tpu_custom_call.1} parent=5 // pred_fallthru
        _
      %p512 = scmp.le.s32.totalorder 2, %s12
      // Predicated region
      $region37: #{tpu_custom_call.1} parent=5 // pred_check
        %p513 = pneg %p512
      $region38: #{tpu_custom_call.1} parent=5 // pred_check_branch
        %515 = sbr.rel (%p513) target = $region40
      $region39: #{tpu_custom_call.1} parent=5 // pred_region
        %s516 = ssub.s32 %s12, 2
        // Predicated region
        $region41: #{tpu_custom_call.1} parent=39 // pred_check
          %p517 = pneg %p109
        $region42: #{tpu_custom_call.1} parent=39 // pred_check_branch
          %519 = sbr.rel (%p517) target = $region44
        $region43: #{tpu_custom_call.1} parent=39 // pred_region
          %s520 = sand.u32 %s94, 1
          %s521 = scalar_lea.sflag [#allocation3], %s520
          %s522 = sand.u32 %s94, 1
          %s523 = smul.addr %s522, 8
          %s524 = scalar_lea.vmem [#allocation2], %s523
          %526 = dma.done %s521, 128
        $region44: #{tpu_custom_call.1} parent=39 // pred_fallthru
          _
      $region40: #{tpu_custom_call.1} parent=5 // pred_fallthru
        _
    $region6: #{tpu_custom_call.1} parent=1 // loop_footer
      %s16 = sadd.s32 1, %s12
    $region7: #{tpu_custom_call.1} parent=1 // loop_footer_branch
      %11 = sbr.rel target = $region3
    $region8: #{tpu_custom_call.1} parent=1 // loop_exit
      _
    %527 = vsyncpa [#allocation3], 1
    %s528 = scalar_lea.sflag [#allocation3], 1
    %529 = vsyncpa %s528, 1

</llo_original>
